<compile_context>
chip_gen: v5e
topology: v5e:2x2
jax: 0.10.0
libtpu: 0.0.40
codegen_flags: <defaults>
</compile_context>

<pallas_src>
import functools
import numpy as np

import jax
import jax.numpy as jnp
from jax.experimental import pallas as pl
from jax.experimental.pallas import tpu as pltpu


# ----------------------------------------------------------------------------
# helpers
# ----------------------------------------------------------------------------
def _round_up(x, m):
    return (x + m - 1) // m * m


def _pick_tn(npad):
    return 256 if npad % 256 == 0 else 128


# ----------------------------------------------------------------------------
# Pallas kernel 1: tiled matmul + shift (+residual) (+relu)
# ----------------------------------------------------------------------------
def _make_mm_kernel(*, act, has_res, multi_k):
    def epilogue(acc, shift_ref, res_ref, o_ref):
        y = acc + shift_ref[...]
        if res_ref is not None:
            y = y + res_ref[...]
        if act == "relu":
            y = jnp.maximum(y, 0.0)
        o_ref[...] = y.astype(o_ref.dtype)

    if not multi_k:
        def kernel(*refs):
            if has_res:
                x_ref, w_ref, shift_ref, res_ref, o_ref = refs
            else:
                x_ref, w_ref, shift_ref, o_ref = refs
                res_ref = None
            acc = jnp.dot(x_ref[...], w_ref[...],
                          preferred_element_type=jnp.float32)
            epilogue(acc, shift_ref, res_ref, o_ref)
        return kernel

    def kernel(*refs):
        if has_res:
            x_ref, w_ref, shift_ref, res_ref, o_ref, acc_ref = refs
        else:
            x_ref, w_ref, shift_ref, o_ref, acc_ref = refs
            res_ref = None
        k = pl.program_id(2)

        @pl.when(k == 0)
        def _():
            acc_ref[...] = jnp.zeros_like(acc_ref)

        acc_ref[...] += jnp.dot(x_ref[...], w_ref[...],
                                preferred_element_type=jnp.float32)

        @pl.when(k == pl.num_programs(2) - 1)
        def _():
            epilogue(acc_ref[...], shift_ref, res_ref, o_ref)
    return kernel


def _matmul_shift_act(x, w, shift, res=None, act="none"):
    """y = act(x @ w + shift [+ res]); x:[M,K] f32, w:[K,N] f32, shift:[N]."""
    M, K = x.shape
    N = w.shape[1]

    # tile selection: tm<=256, tn in {128,256}, bk up to 512 (K reduction last)
    if M <= 256:
        tm = _round_up(M, 8)
        Mp = tm
    else:
        tm = 256
        Mp = _round_up(M, tm)
    Np = _round_up(N, 128)
    tn = _pick_tn(Np)
    if K <= 512:
        bk, Kp = K, K
    else:
        bk = 512
        Kp = _round_up(K, bk)
    nm, nn, nk = Mp // tm, Np // tn, Kp // bk

    # pad and cast operands to bf16 for the MXU; epilogue stays f32
    xp = jnp.pad(x, ((0, Mp - M), (0, Kp - K))).astype(jnp.bfloat16)
    wp = jnp.pad(w, ((0, Kp - K), (0, Np - N))).astype(jnp.bfloat16)
    sp = jnp.pad(shift.reshape(1, N), ((0, 0), (0, Np - N))).astype(jnp.float32)
    has_res = res is not None
    inputs = [xp, wp, sp]
    if has_res:
        inputs.append(jnp.pad(res, ((0, Mp - M), (0, Np - N)))
                      .astype(jnp.float32))

    kernel = _make_mm_kernel(act=act, has_res=has_res, multi_k=(nk > 1))

    if nk == 1:
        grid = (nm, nn)
        in_specs = [
            pl.BlockSpec((tm, Kp), lambda i, j: (i, 0)),
            pl.BlockSpec((Kp, tn), lambda i, j: (0, j)),
            pl.BlockSpec((1, tn), lambda i, j: (0, j)),
        ]
        if has_res:
            in_specs.append(pl.BlockSpec((tm, tn), lambda i, j: (i, j)))
        out_specs = pl.BlockSpec((tm, tn), lambda i, j: (i, j))
        scratch = []
        dims = ("parallel", "parallel")
    else:
        grid = (nm, nn, nk)
        in_specs = [
            pl.BlockSpec((tm, bk), lambda i, j, k: (i, k)),
            pl.BlockSpec((bk, tn), lambda i, j, k: (k, j)),
            pl.BlockSpec((1, tn), lambda i, j, k: (0, j)),
        ]
        if has_res:
            in_specs.append(pl.BlockSpec((tm, tn), lambda i, j, k: (i, j)))
        out_specs = pl.BlockSpec((tm, tn), lambda i, j, k: (i, j))
        scratch = [pltpu.VMEM((tm, tn), jnp.float32)]
        dims = ("parallel", "parallel", "arbitrary")

    out = pl.pallas_call(
        kernel,
        out_shape=jax.ShapeDtypeStruct((Mp, Np), jnp.float32),
        grid_spec=pltpu.PrefetchScalarGridSpec(
            num_scalar_prefetch=0,
            grid=grid,
            in_specs=in_specs,
            out_specs=out_specs,
            scratch_shapes=scratch),
        compiler_params=pltpu.CompilerParams(dimension_semantics=dims),
    )(*inputs)
    return out[:M, :N]


# ----------------------------------------------------------------------------
# Pallas kernel 2: direct stride-1 "same" conv (tap streaming, no im2col blowup)
# ----------------------------------------------------------------------------
def _make_conv_direct_kernel(*, starts, L, act):
    def kernel(x_ref, w_ref, shift_ref, o_ref):
        acc = None
        for t, s in enumerate(starts):               # static tap unroll
            xt = x_ref[0, s:s + L, :]                # (L, Cin), resident input
            contrib = jnp.dot(xt, w_ref[t],
                              preferred_element_type=jnp.float32)
            acc = contrib if acc is None else acc + contrib
        y = acc + shift_ref[...]
        if act == "relu":
            y = jnp.maximum(y, 0.0)
        o_ref[0] = y.astype(o_ref.dtype)
    return kernel


def _conv_same_direct(x, w, shift, *, dilation, act):
    """KxK, stride 1, padding = dilation*(k//2) conv + shift + act (NHWC)."""
    N, H, W, Cin = x.shape
    kh, kw, _, Cout = w.shape
    pad = dilation * (kh // 2)
    Ho, Wo = H, W
    Hp, Wp = H + 2 * pad, W + 2 * pad
    # valid outputs of every tap live at flattened offsets oh*Wp + ow
    L = (Ho - 1) * Wp + Wo

    Coutp = _round_up(Cout, 128)
    tn = _pick_tn(Coutp)
    nn = Coutp // tn

    xp = jnp.pad(x, ((0, 0), (pad, pad), (pad, pad), (0, 0)))
    x2 = xp.reshape(N, Hp * Wp, Cin).astype(jnp.bfloat16)
    wr = jnp.pad(w, ((0, 0), (0, 0), (0, 0), (0, Coutp - Cout)))
    wr = wr.reshape(kh * kw, Cin, Coutp).astype(jnp.bfloat16)
    sp = jnp.pad(shift.reshape(1, Cout),
                 ((0, 0), (0, Coutp - Cout))).astype(jnp.float32)

    starts = tuple(i * dilation * Wp + j * dilation
                   for i in range(kh) for j in range(kw))
    kernel = _make_conv_direct_kernel(starts=starts, L=L, act=act)

    out = pl.pallas_call(
        kernel,
        out_shape=jax.ShapeDtypeStruct((N, L, Coutp), jnp.float32),
        grid_spec=pltpu.PrefetchScalarGridSpec(
            num_scalar_prefetch=0,
            grid=(N, nn),
            in_specs=[
                pl.BlockSpec((1, Hp * Wp, Cin), lambda n, j: (n, 0, 0)),
                pl.BlockSpec((kh * kw, Cin, tn), lambda n, j: (0, 0, j)),
                pl.BlockSpec((1, tn), lambda n, j: (0, j)),
            ],
            out_specs=pl.BlockSpec((1, L, tn), lambda n, j: (n, 0, j)),
        ),
        compiler_params=pltpu.CompilerParams(
            dimension_semantics=("parallel", "parallel")),
    )(x2, wr, sp)

    # un-flatten: keep rows oh*Wp + ow with ow < Wo; drop the spill rows.
    out = jnp.pad(out, ((0, 0), (0, Ho * Wp - L), (0, 0)))
    out = out.reshape(N, Ho, Wp, Coutp)[:, :, :Wo, :Cout]
    return out


# ----------------------------------------------------------------------------
# Pallas kernel 3: maxpool 3x3 / stride 2 / pad 1 (tree max, row-tiled)
# ----------------------------------------------------------------------------
def _maxpool_kernel(x_ref, o_ref):
    o_ref[...] = jnp.max(x_ref[...], axis=0)


@jax.jit
def maxpool_3x3_s2_p1(x):
    N, H, W, C = x.shape
    xp = jnp.pad(x, ((0, 0), (1, 1), (1, 1), (0, 0)),
                 constant_values=-jnp.inf)
    Ho = (H + 2 - 3) // 2 + 1
    Wo = (W + 2 - 3) // 2 + 1
    taps = [xp[:, i:i + 2 * (Ho - 1) + 1:2, j:j + 2 * (Wo - 1) + 1:2, :]
            for i in range(3) for j in range(3)]
    t = jnp.stack(taps, 0).reshape(9, N * Ho * Wo, C)

    M = N * Ho * Wo
    tm = 512 if M > 512 else _round_up(M, 8)
    Mp = _round_up(M, tm)
    t = jnp.pad(t, ((0, 0), (0, Mp - M), (0, 0)))

    out = pl.pallas_call(
        _maxpool_kernel,
        out_shape=jax.ShapeDtypeStruct((Mp, C), jnp.float32),
        grid_spec=pltpu.PrefetchScalarGridSpec(
            num_scalar_prefetch=0,
            grid=(Mp // tm,),
            in_specs=[pl.BlockSpec((9, tm, C), lambda i: (0, i, 0))],
            out_specs=pl.BlockSpec((tm, C), lambda i: (i, 0)),
        ),
        compiler_params=pltpu.CompilerParams(
            dimension_semantics=("parallel",)),
    )(t)
    return out[:M].reshape(N, Ho, Wo, C)


# ----------------------------------------------------------------------------
# Conv + folded BN (+residual) (+ReLU) dispatcher
# ----------------------------------------------------------------------------
def _im2col(x, kh, kw, stride, padding, dilation):
    N, H, W, C = x.shape
    xp = jnp.pad(x, ((0, 0), (padding, padding), (padding, padding), (0, 0)))
    Hp, Wp = H + 2 * padding, W + 2 * padding
    Ho = (Hp - (dilation * (kh - 1) + 1)) // stride + 1
    Wo = (Wp - (dilation * (kw - 1) + 1)) // stride + 1
    taps = []
    for i in range(kh):
        for j in range(kw):
            r0, c0 = i * dilation, j * dilation
            taps.append(xp[:, r0:r0 + (Ho - 1) * stride + 1:stride,
                           c0:c0 + (Wo - 1) * stride + 1:stride, :])
    cols = jnp.concatenate(taps, axis=-1) if len(taps) > 1 else taps[0]
    return cols.reshape(N * Ho * Wo, kh * kw * C), (N, Ho, Wo)


@functools.partial(jax.jit,
                   static_argnames=("stride", "padding", "dilation", "act"))
def conv_bn_act(x, w, bn, res=None, *, stride=1, padding=0, dilation=1,
                act="none"):
    """Conv2d (HWIO weights, no bias) + folded BN + optional residual/ReLU."""
    kh, kw, cin, cout = w.shape
    scale = bn["gamma"] * jax.lax.rsqrt(bn["var"] + 1e-5)
    shift = bn["beta"] - bn["mean"] * scale
    w_f = w * scale                                  # fold BN scale into weights

    if kh == 1 and kw == 1:
        if stride > 1:
            x = x[:, ::stride, ::stride, :]
        N, H, W, _ = x.shape
        res2 = None if res is None else res.reshape(N * H * W, cout)
        y = _matmul_shift_act(x.reshape(N * H * W, cin),
                              w_f.reshape(cin, cout), shift,
                              res=res2, act=act)
        return y.reshape(N, H, W, cout)

    if stride == 1 and padding == dilation * (kh // 2) and res is None:
        return _conv_same_direct(x, w_f, shift, dilation=dilation, act=act)

    # fallback (7x7/s2 stem conv, the single strided 3x3 conv)
    cols, (N, Ho, Wo) = _im2col(x, kh, kw, stride, padding, dilation)
    y = _matmul_shift_act(cols, w_f.reshape(kh * kw * cin, cout), shift,
                          act=act)
    return y.reshape(N, Ho, Wo, cout)


# ----------------------------------------------------------------------------
# Deterministic parameter construction (shapes match torchvision resnet50)
# ----------------------------------------------------------------------------
class ParamGen:
    def __init__(self, seed=0):
        self.key = jax.random.PRNGKey(seed)

    def _next(self):
        self.key, sub = jax.random.split(self.key)
        return sub

    def conv(self, kh, kw, cin, cout):
        fan_in = kh * kw * cin
        w = jax.random.normal(self._next(), (kh, kw, cin, cout),
                              jnp.float32) * np.sqrt(2.0 / fan_in)
        return {"w": w}

    def bn(self, c):
        return {
            "gamma": 1.0 + 0.1 * jax.random.normal(self._next(), (c,), jnp.float32),
            "beta": 0.1 * jax.random.normal(self._next(), (c,), jnp.float32),
            "mean": 0.1 * jax.random.normal(self._next(), (c,), jnp.float32),
            "var": 0.5 + jnp.abs(jax.random.normal(self._next(), (c,), jnp.float32)),
        }


def build_params(seed=0):
    g = ParamGen(seed)
    P = {"conv1": g.conv(7, 7, 3, 64), "bn1": g.bn(64)}

    # (planes, num_blocks, conv2 strides, conv2 dilations); layer3/4 atrous mods
    layer_cfgs = [
        (64, 3, [1, 1, 1], [1, 1, 1]),
        (128, 4, [2, 1, 1, 1], [1, 1, 1, 1]),
        (256, 6, [1] * 6, [1, 2, 5, 9, 1, 2]),
        (512, 3, [1] * 3, [5, 9, 17]),
    ]
    inplanes = 64
    layers = []
    for planes, nb, strides, dils in layer_cfgs:
        blocks = []
        for bidx in range(nb):
            has_ds = (bidx == 0)
            bp = {
                "conv1": g.conv(1, 1, inplanes, planes), "bn1": g.bn(planes),
                "conv2": g.conv(3, 3, planes, planes), "bn2": g.bn(planes),
                "conv3": g.conv(1, 1, planes, planes * 4), "bn3": g.bn(planes * 4),
                "stride": strides[bidx], "dilation": dils[bidx],
                "has_ds": has_ds,
            }
            if has_ds:
                bp["ds_conv"] = g.conv(1, 1, inplanes, planes * 4)
                bp["ds_bn"] = g.bn(planes * 4)
            blocks.append(bp)
            inplanes = planes * 4
        layers.append(blocks)
    P["layers"] = layers
    return P


# ----------------------------------------------------------------------------
# Forward pass
# ----------------------------------------------------------------------------
def bottleneck(x, bp):
    out = conv_bn_act(x, bp["conv1"]["w"], bp["bn1"], act="relu")
    out = conv_bn_act(out, bp["conv2"]["w"], bp["bn2"],
                      stride=bp["stride"], padding=bp["dilation"],
                      dilation=bp["dilation"], act="relu")
    if bp["has_ds"]:
        identity = conv_bn_act(x, bp["ds_conv"]["w"], bp["ds_bn"],
                               stride=bp["stride"], act="none")
    else:
        identity = x
    # conv3 with the residual add + ReLU fused into the matmul epilogue
    return conv_bn_act(out, bp["conv3"]["w"], bp["bn3"], res=identity,
                       act="relu")


def atrous_resnet_features(x_nchw, P):
    x = jnp.transpose(x_nchw, (0, 2, 3, 1)).astype(jnp.float32)   # -> NHWC
    x = conv_bn_act(x, P["conv1"]["w"], P["bn1"],
                    stride=2, padding=3, dilation=1, act="relu")
    x = maxpool_3x3_s2_p1(x)
    for blocks in P["layers"]:
        for bp in blocks:
            x = bottleneck(x, bp)
    return jnp.transpose(x, (0, 3, 1, 2))                         # -> NCHW


# ----------------------------------------------------------------------------
if __name__ == "__main__":
    key = jax.random.PRNGKey(0)
    x = jax.random.normal(key, (2, 3, 16, 16), jnp.float32)       # NCHW input

    params = build_params(seed=0)
    y = atrous_resnet_features(x, params)
    y = jax.block_until_ready(y)

    assert y.shape == (2, 2048, 2, 2), y.shape
    assert bool(jnp.all(jnp.isfinite(y)))
    print("KERNEL_OK")
</pallas_src>

<mosaic_0001>
module attributes {stable_mosaic.version = 11 : i64} {
  func.func @kernel(%arg0: i32, %arg1: i32, %arg2: memref<128x147xbf16, #tpu.memory_space<vmem>>, %arg3: memref<147x128xbf16, #tpu.memory_space<vmem>>, %arg4: memref<1x128xf32, #tpu.memory_space<vmem>>, %arg5: memref<128x128xf32, #tpu.memory_space<vmem>>) attributes {dimension_semantics = [#tpu.dimension_semantics<parallel>, #tpu.dimension_semantics<parallel>], iteration_bounds = array<i64: 1, 1>, scalar_prefetch = 0 : i64, scratch_operands = 0 : i64, tpu.core_type = #tpu.core_type<tc>, window_params = [{transform_indices = @transform_0, window_bounds = array<i64: 128, 147>}, {transform_indices = @transform_1, window_bounds = array<i64: 147, 128>}, {transform_indices = @transform_2, window_bounds = array<i64: 1, 128>}, {transform_indices = @transform_3, window_bounds = array<i64: 128, 128>}]} {
    %c0 = arith.constant 0 : index
    %c0_0 = arith.constant 0 : index
    %0 = vector.load %arg2[%c0, %c0_0] : memref<128x147xbf16, #tpu.memory_space<vmem>>, vector<128x147xbf16>
    %c0_1 = arith.constant 0 : index
    %c0_2 = arith.constant 0 : index
    %1 = vector.load %arg3[%c0_1, %c0_2] : memref<147x128xbf16, #tpu.memory_space<vmem>>, vector<147x128xbf16>
    %cst = arith.constant dense<0.000000e+00> : vector<128x128xf32>
    %2 = tpu.matmul %0, %1, %cst {dimension_numbers = #tpu.dot_dimension_numbers<[1], [0], [0], [1], [0, 0, 1, 1], [], []>} : vector<128x147xbf16>, vector<147x128xbf16>, vector<128x128xf32> -> vector<128x128xf32>
    %c0_3 = arith.constant 0 : index
    %c0_4 = arith.constant 0 : index
    %3 = vector.load %arg4[%c0_3, %c0_4] : memref<1x128xf32, #tpu.memory_space<vmem>>, vector<1x128xf32>
    %4 = vector.broadcast %3 : vector<1x128xf32> to vector<128x128xf32>
    %5 = arith.addf %2, %4 : vector<128x128xf32>
    %cst_5 = arith.constant 0.000000e+00 : f32
    %6 = vector.broadcast %cst_5 : f32 to vector<128x128xf32>
    %7 = arith.maximumf %5, %6 : vector<128x128xf32>
    %c0_6 = arith.constant 0 : index
    %c0_7 = arith.constant 0 : index
    %8 = vector.load %arg5[%c0_6, %c0_7] : memref<128x128xf32, #tpu.memory_space<vmem>>, vector<128x128xf32>
    tpu.vector_store %arg5[%c0_6, %c0_7], %7 {strides = array<i32>} : memref<128x128xf32, #tpu.memory_space<vmem>>, vector<128x128xf32>,
    return
  }
  func.func @transform_0(%arg0: i32, %arg1: i32) -> (i32, i32) {
    %c0_i32 = arith.constant 0 : i32
    %c0_i32_0 = arith.constant 0 : i32
    return %arg0, %c0_i32 : i32, i32
  }
  func.func @transform_1(%arg0: i32, %arg1: i32) -> (i32, i32) {
    %c0_i32 = arith.constant 0 : i32
    %c0_i32_0 = arith.constant 0 : i32
    return %c0_i32, %arg1 : i32, i32
  }
  func.func @transform_2(%arg0: i32, %arg1: i32) -> (i32, i32) {
    %c0_i32 = arith.constant 0 : i32
    %c0_i32_0 = arith.constant 0 : i32
    return %c0_i32, %arg1 : i32, i32
  }
  func.func @transform_3(%arg0: i32, %arg1: i32) -> (i32, i32) {
    %c0_i32 = arith.constant 0 : i32
    return %arg0, %arg1 : i32, i32
  }
}

</mosaic_0001>

<llo_original>
// kernel: conv_bn_act.1
$region0: #{conv_bn_act.1}
  #allocation0 [shape = 'u32[]', space=smem, size = 0x4, offset = 0x4, fixed_abs, tag = 'smem constant byte address 0x4 - core index']
  #allocation1 [shape = 'u32[72,128]{1,0:T(1,128)}', space=vmem, size = 0x9000, scoped, tag = 'internal scratch']
  %s0 = inlined_call_operand.vmem [shape: bf16[128,147], index: 0, kind: input, shape index: {}]
  %s1 = inlined_call_operand.vmem [shape: bf16[147,128], index: 1, kind: input, shape index: {}]
  %s2 = inlined_call_operand.vmem [shape: f32[1,128], index: 2, kind: input, shape index: {}]
  %s3 = inlined_call_operand.hbm [shape: f32[128,128], index: 3, kind: output, shape index: {}]
  %s4 = sld [smem:[#allocation0]]
  $region22: #{conv_bn_act.1} parent=0
    _
  %s6 = ssub.s32 1, %s4
  %s7 = scalar_select 0, %s6, %s4
  $region1: #{conv_bn_act.1} parent=0
    #allocation2 [shape = 'u8[65536]{0}', space=vmem, size = 0x10000, scoped, tag = 'output window, operand 0, single buffered']
    #allocation3 [shape = 's32[1]{0}', space=sflag, size = 0x4, scoped, tag = 'scoped memory for conv_bn_act.1']
    %8 = vsyncpa [#allocation3], 0
    // Predicated region
    $region2: #{conv_bn_act.1} parent=1 // pred_check
      _
    $region3: #{conv_bn_act.1} parent=1 // pred_check_branch
      %10 = sbr.rel (0) target = $region5
    $region4: #{conv_bn_act.1} parent=1 // pred_region
      _
    $region5: #{conv_bn_act.1} parent=1 // pred_fallthru
      _
    // Predicated region
    $region6: #{conv_bn_act.1} parent=1 // pred_check
      _
    $region7: #{conv_bn_act.1} parent=1 // pred_check_branch
      %12 = sbr.rel (0) target = $region9
    $region8: #{conv_bn_act.1} parent=1 // pred_region
      _
    $region9: #{conv_bn_act.1} parent=1 // pred_fallthru
      _
    // Predicated region
    $region10: #{conv_bn_act.1} parent=1 // pred_check
      _
    $region11: #{conv_bn_act.1} parent=1 // pred_check_branch
      %14 = sbr.rel (0) target = $region13
    $region12: #{conv_bn_act.1} parent=1 // pred_region
      _
    $region13: #{conv_bn_act.1} parent=1 // pred_fallthru
      _
    %v16 = vld [vmem:[%s0] sm:$0xff]
    %v17 = vld [vmem:[%s0 + $0x8] sm:$0xff]
    %v18 = vld [vmem:[%s0 + $0x10] sm:$0xff]
    %v19 = vld [vmem:[%s0 + $0x18] sm:$0xff]
    %v20 = vld [vmem:[%s0 + $0x20] sm:$0xff]
    %v21 = vld [vmem:[%s0 + $0x28] sm:$0xff]
    %v22 = vld [vmem:[%s0 + $0x30] sm:$0xff]
    %v23 = vld [vmem:[%s0 + $0x38] sm:$0xff]
    %v24 = vld [vmem:[%s0 + $0x40] sm:$0xff]
    %v25 = vld [vmem:[%s0 + $0x48] sm:$0xff]
    %v26 = vld [vmem:[%s0 + $0x50] sm:$0xff]
    %v27 = vld [vmem:[%s0 + $0x58] sm:$0xff]
    %v28 = vld [vmem:[%s0 + $0x60] sm:$0xff]
    %v29 = vld [vmem:[%s0 + $0x68] sm:$0xff]
    %v30 = vld [vmem:[%s0 + $0x70] sm:$0xff]
    %v31 = vld [vmem:[%s0 + $0x78] sm:$0xff]
    %v32 = vld [vmem:[%s1] sm:$0xf]
    %v33 = vld [vmem:[%s1 + $0x4] sm:$0xf]
    %v34 = vld [vmem:[%s1 + $0x8] sm:$0xf]
    %v35 = vld [vmem:[%s1 + $0xc] sm:$0xf]
    %v36 = vld [vmem:[%s1 + $0x10] sm:$0xf]
    %v37 = vld [vmem:[%s1 + $0x14] sm:$0xf]
    %v38 = vld [vmem:[%s1 + $0x18] sm:$0xf]
    %v39 = vld [vmem:[%s1 + $0x1c] sm:$0xf]
    %v40 = vld [vmem:[%s1 + $0x20] sm:$0xf]
    %v41 = vld [vmem:[%s1 + $0x24] sm:$0xf]
    %v42 = vld [vmem:[%s1 + $0x28] sm:$0xf]
    %v43 = vld [vmem:[%s1 + $0x2c] sm:$0xf]
    %v44 = vld [vmem:[%s1 + $0x30] sm:$0xf]
    %v45 = vld [vmem:[%s1 + $0x34] sm:$0xf]
    %v46 = vld [vmem:[%s1 + $0x38] sm:$0xf]
    %v47 = vld [vmem:[%s1 + $0x3c] sm:$0xf]
    %v48 = vld [vmem:[%s1 + $0x40] sm:$0xf]
    %v49 = vld [vmem:[%s1 + $0x44] sm:$0xf]
    %v50 = vld [vmem:[%s1 + $0x48] sm:$0x3]
    %v51 = vld [vmem:[%s2] sm:$0x1]
    %v53 = vperm.slane %v51, 0
    %v71 = vunpack.c.l.b16 %v16
    %v72 = vunpack.c.h.b16 %v16
    %v73 = vunpack.c.l.b16 %v17
    %v74 = vunpack.c.h.b16 %v17
    %v75 = vunpack.c.l.b16 %v18
    %v76 = vunpack.c.h.b16 %v18
    %v77 = vunpack.c.l.b16 %v19
    %v78 = vunpack.c.h.b16 %v19
    %v79 = vunpack.c.l.b16 %v20
    %v80 = vunpack.c.h.b16 %v20
    %v81 = vunpack.c.l.b16 %v21
    %v82 = vunpack.c.h.b16 %v21
    %v83 = vunpack.c.l.b16 %v22
    %v84 = vunpack.c.h.b16 %v22
    %v85 = vunpack.c.l.b16 %v23
    %v86 = vunpack.c.h.b16 %v23
    %v87 = vunpack.c.l.b16 %v24
    %v88 = vunpack.c.h.b16 %v24
    %v89 = vunpack.c.l.b16 %v25
    %v90 = vunpack.c.h.b16 %v25
    %v91 = vunpack.c.l.b16 %v26
    %v92 = vunpack.c.h.b16 %v26
    %v93 = vunpack.c.l.b16 %v27
    %v94 = vunpack.c.h.b16 %v27
    %v95 = vunpack.c.l.b16 %v28
    %v96 = vunpack.c.h.b16 %v28
    %v97 = vunpack.c.l.b16 %v29
    %v98 = vunpack.c.h.b16 %v29
    %v99 = vunpack.c.l.b16 %v30
    %v100 = vunpack.c.h.b16 %v30
    %v101 = vunpack.c.l.b16 %v31
    %v102 = vunpack.c.h.b16 %v31
    %v103 = vpack.c.b16 %v73, %v71
    %v104 = vpack.c.b16 %v74, %v72
    %v105 = vpack.c.b16 %v77, %v75
    %v106 = vpack.c.b16 %v78, %v76
    %v107 = vpack.c.b16 %v81, %v79
    %v108 = vpack.c.b16 %v82, %v80
    %v109 = vpack.c.b16 %v85, %v83
    %v110 = vpack.c.b16 %v86, %v84
    %v111 = vpack.c.b16 %v89, %v87
    %v112 = vpack.c.b16 %v90, %v88
    %v113 = vpack.c.b16 %v93, %v91
    %v114 = vpack.c.b16 %v94, %v92
    %v115 = vpack.c.b16 %v97, %v95
    %v116 = vpack.c.b16 %v98, %v96
    %v117 = vpack.c.b16 %v101, %v99
    %v118 = vpack.c.b16 %v102, %v100
    %v146 = vunpack.c.l.b16 %v32
    %v147 = vunpack.c.l.b16 %v33
    %v148 = vunpack.c.l.b16 %v34
    %v149 = vunpack.c.l.b16 %v35
    %v150 = vunpack.c.l.b16 %v36
    %v151 = vunpack.c.l.b16 %v37
    %v152 = vunpack.c.l.b16 %v38
    %v153 = vunpack.c.l.b16 %v39
    %v154 = vunpack.c.l.b16 %v40
    %v155 = vunpack.c.l.b16 %v41
    %v156 = vunpack.c.l.b16 %v42
    %v157 = vunpack.c.l.b16 %v43
    %v158 = vunpack.c.l.b16 %v44
    %v159 = vunpack.c.l.b16 %v45
    %v160 = vunpack.c.l.b16 %v46
    %v161 = vunpack.c.l.b16 %v47
    %v162 = vunpack.c.l.b16 %v48
    %v163 = vunpack.c.l.b16 %v49
    %v164 = vunpack.c.l.b16 %v50
    %v165 = vpack.c.b16 %v147, %v146
    %v166 = vpack.c.b16 %v149, %v148
    %v167 = vpack.c.b16 %v151, %v150
    %v168 = vpack.c.b16 %v153, %v152
    %v169 = vpack.c.b16 %v155, %v154
    %v170 = vpack.c.b16 %v157, %v156
    %v171 = vpack.c.b16 %v159, %v158
    %v172 = vpack.c.b16 %v161, %v160
    %v173 = vpack.c.b16 %v163, %v162
    %v174 = vpack.c.b16 %v164, %v164
    %vm184 = vcmask 154624
    %v186 = vsel %vm184, %v104, 0
    %v189 = vsel %vm184, %v106, 0
    %v192 = vsel %vm184, %v108, 0
    %v195 = vsel %vm184, %v110, 0
    %v198 = vsel %vm184, %v112, 0
    %v201 = vsel %vm184, %v114, 0
    %v204 = vsel %vm184, %v116, 0
    %v207 = vsel %vm184, %v118, 0
    %vm209 = vcmask 1040384
    %vm210 = vcmask 1041408
    %v211 = vsel %vm209, 4294967295, 65535
    %v212 = vsel %vm210, %v211, 0
    %v214 = vand.u32 %v174, %v212
    %216 = vmatpush.bf16.msra.mxu0 %v172
    %217 = vmatpush.bf16.msra.mxu0 %v171
    %218 = vmatpush.bf16.msra.mxu0 %v170
    %219 = vmatpush.bf16.msra.mxu0 %v169
    %220 = vmatpush.bf16.msra.mxu0 %v168
    %221 = vmatpush.bf16.msra.mxu0 %v167
    %222 = vmatpush.bf16.msra.mxu0 %v166
    %223 = vmatpush.bf16.msra.mxu0 %v165
    %224 = vmatmul.bf16.gmra.mxu0 %v103
    %v225 = vpop.f32.mrf.mxu0
    %v226 = vadd.f32 %v53, %v225
    %v227 = vpop.f32.mrf.mxu0
    %v228 = vadd.f32 %v53, %v227
    %229 = vmatmul.bf16.gmra.mxu0 %v105
    %v230 = vpop.f32.mrf.mxu0
    %v231 = vadd.f32 %v53, %v230
    %v232 = vpop.f32.mrf.mxu0
    %v233 = vadd.f32 %v53, %v232
    %234 = vmatmul.bf16.gmra.mxu0 %v107
    %v235 = vpop.f32.mrf.mxu0
    %v236 = vadd.f32 %v53, %v235
    %v237 = vpop.f32.mrf.mxu0
    %v238 = vadd.f32 %v53, %v237
    %239 = vmatmul.bf16.gmra.mxu0 %v109
    %v240 = vpop.f32.mrf.mxu0
    %v241 = vadd.f32 %v53, %v240
    %v242 = vpop.f32.mrf.mxu0
    %v243 = vadd.f32 %v53, %v242
    %244 = vmatmul.bf16.gmra.mxu0 %v111
    %v245 = vpop.f32.mrf.mxu0
    %v246 = vadd.f32 %v53, %v245
    %v247 = vpop.f32.mrf.mxu0
    %v248 = vadd.f32 %v53, %v247
    %249 = vmatmul.bf16.gmra.mxu0 %v113
    %v250 = vpop.f32.mrf.mxu0
    %v251 = vadd.f32 %v53, %v250
    %v252 = vpop.f32.mrf.mxu0
    %v253 = vadd.f32 %v53, %v252
    %254 = vmatmul.bf16.gmra.mxu0 %v115
    %v255 = vpop.f32.mrf.mxu0
    %v256 = vadd.f32 %v53, %v255
    %v257 = vpop.f32.mrf.mxu0
    %v258 = vadd.f32 %v53, %v257
    %259 = vmatmul.bf16.gmra.mxu0 %v117
    %v260 = vpop.f32.mrf.mxu0
    %v261 = vadd.f32 %v53, %v260
    %v262 = vpop.f32.mrf.mxu0
    %v263 = vadd.f32 %v53, %v262
    %264 = vdwg.mxu0
    %265 = vmatpush.bf16.msra.mxu0 0
    %266 = vmatpush.bf16.msra.mxu0 0
    %267 = vmatpush.bf16.msra.mxu0 0
    %268 = vmatpush.bf16.msra.mxu0 0
    %269 = vmatpush.bf16.msra.mxu0 0
    %270 = vmatpush.bf16.msra.mxu0 0
    %271 = vmatpush.bf16.msra.mxu0 %v214
    %272 = vmatpush.bf16.msra.mxu0 %v173
    %273 = vmatmul.bf16.gmra.mxu0 %v186
    %v274 = vpop.f32.mrf.mxu0
    %v275 = vadd.f32 %v226, %v274
    %v276 = vpop.f32.mrf.mxu0
    %v277 = vadd.f32 %v228, %v276
    %278 = vmatmul.bf16.gmra.mxu0 %v189
    %v279 = vpop.f32.mrf.mxu0
    %v280 = vadd.f32 %v231, %v279
    %v281 = vpop.f32.mrf.mxu0
    %v282 = vadd.f32 %v233, %v281
    %283 = vmatmul.bf16.gmra.mxu0 %v192
    %v284 = vpop.f32.mrf.mxu0
    %v285 = vadd.f32 %v236, %v284
    %v286 = vpop.f32.mrf.mxu0
    %v287 = vadd.f32 %v238, %v286
    %288 = vmatmul.bf16.gmra.mxu0 %v195
    %v289 = vpop.f32.mrf.mxu0
    %v290 = vadd.f32 %v241, %v289
    %v291 = vpop.f32.mrf.mxu0
    %v292 = vadd.f32 %v243, %v291
    %293 = vmatmul.bf16.gmra.mxu0 %v198
    %v294 = vpop.f32.mrf.mxu0
    %v295 = vadd.f32 %v246, %v294
    %v296 = vpop.f32.mrf.mxu0
    %v297 = vadd.f32 %v248, %v296
    %298 = vmatmul.bf16.gmra.mxu0 %v201
    %v299 = vpop.f32.mrf.mxu0
    %v300 = vadd.f32 %v251, %v299
    %v301 = vpop.f32.mrf.mxu0
    %v302 = vadd.f32 %v253, %v301
    %303 = vmatmul.bf16.gmra.mxu0 %v204
    %v304 = vpop.f32.mrf.mxu0
    %v305 = vadd.f32 %v256, %v304
    %v306 = vpop.f32.mrf.mxu0
    %v307 = vadd.f32 %v258, %v306
    %308 = vmatmul.bf16.gmra.mxu0 %v207
    %v309 = vpop.f32.mrf.mxu0
    %v310 = vadd.f32 %v261, %v309
    %v311 = vpop.f32.mrf.mxu0
    %v312 = vadd.f32 %v263, %v311
    %313 = vdwg.mxu0
    %v314 = vmax.f32 %v275, 0.0
    %v315 = vmax.f32 %v277, 0.0
    %v316 = vmax.f32 %v280, 0.0
    %v317 = vmax.f32 %v282, 0.0
    %v318 = vmax.f32 %v285, 0.0
    %v319 = vmax.f32 %v287, 0.0
    %v320 = vmax.f32 %v290, 0.0
    %v321 = vmax.f32 %v292, 0.0
    %v322 = vmax.f32 %v295, 0.0
    %v323 = vmax.f32 %v297, 0.0
    %v324 = vmax.f32 %v300, 0.0
    %v325 = vmax.f32 %v302, 0.0
    %v326 = vmax.f32 %v305, 0.0
    %v327 = vmax.f32 %v307, 0.0
    %v328 = vmax.f32 %v310, 0.0
    %v329 = vmax.f32 %v312, 0.0
    %330 = vst [vmem:[#allocation2] sm:$0xff] %v314
    %331 = vst [vmem:[#allocation2 + $0x8] sm:$0xff] %v315
    %332 = vst [vmem:[#allocation2 + $0x10] sm:$0xff] %v316
    %333 = vst [vmem:[#allocation2 + $0x18] sm:$0xff] %v317
    %334 = vst [vmem:[#allocation2 + $0x20] sm:$0xff] %v318
    %335 = vst [vmem:[#allocation2 + $0x28] sm:$0xff] %v319
    %336 = vst [vmem:[#allocation2 + $0x30] sm:$0xff] %v320
    %337 = vst [vmem:[#allocation2 + $0x38] sm:$0xff] %v321
    %338 = vst [vmem:[#allocation2 + $0x40] sm:$0xff] %v322
    %339 = vst [vmem:[#allocation2 + $0x48] sm:$0xff] %v323
    %340 = vst [vmem:[#allocation2 + $0x50] sm:$0xff] %v324
    %341 = vst [vmem:[#allocation2 + $0x58] sm:$0xff] %v325
    %342 = vst [vmem:[#allocation2 + $0x60] sm:$0xff] %v326
    %343 = vst [vmem:[#allocation2 + $0x68] sm:$0xff] %v327
    %344 = vst [vmem:[#allocation2 + $0x70] sm:$0xff] %v328
    %345 = vst [vmem:[#allocation2 + $0x78] sm:$0xff] %v329
    // Predicated region
    $region14: #{conv_bn_act.1} parent=1 // pred_check
      _
    $region15: #{conv_bn_act.1} parent=1 // pred_check_branch
      %347 = sbr.rel (0) target = $region17
    $region16: #{conv_bn_act.1} parent=1 // pred_region
      %349 = vsyncadd [#allocation3], 0
      %s350 = sshll.u32 [#allocation2], 4
      %s351 = int_to_ptr.vmem [resolvable:$true] %s350
      %s352 = sshll.u32 %s3, 4
      %s353 = int_to_ptr.hbm [resolvable:$true] %s352
      %358 = dma.vmem_to_hbm [thread:$0]  %s351, 2048, %s353, [#allocation3], 128, 128, 8
    $region17: #{conv_bn_act.1} parent=1 // pred_fallthru
      _
    // Predicated region
    $region18: #{conv_bn_act.1} parent=1 // pred_check
      _
    $region19: #{conv_bn_act.1} parent=1 // pred_check_branch
      %360 = sbr.rel (0) target = $region21
    $region20: #{conv_bn_act.1} parent=1 // pred_region
      %362 = dma.done [#allocation3], 2048
    $region21: #{conv_bn_act.1} parent=1 // pred_fallthru
      _
    %363 = vsyncpa [#allocation3], 1

</llo_original>
